<compile_context>
chip_gen: v7x
topology: tpu7x:2x2x1
jax: 0.10.0
libtpu: 0.0.40
codegen_flags: <defaults>
</compile_context>

<pallas_src>
import jax
import jax.numpy as jnp
from jax.experimental import pallas as pl
from jax.experimental.pallas import tpu as pltpu


def _choose_tile_rows(n_rows, n_cls, num_envs, itemsize):
    """Byte-based batch tile: ~16 MiB of double-buffered logits blocks total."""
    # TODO(synk): for very large class counts (C >= ~8K) also tile the class
    # axis with an online logsumexp so a single block stays within VMEM.
    total_budget = 16 << 20                       # all envs, double-buffered
    per_block = total_budget // (2 * num_envs)
    rows = per_block // max(1, n_cls * itemsize)
    rows = max(16, (rows // 16) * 16)             # sublane-friendly for f32 & bf16
    if rows >= n_rows:
        return n_rows                             # single full-extent batch block
    return rows


def _make_kernel(num_envs, n_rows, tile_rows, mask_rows):
    def kernel(*refs):
        out_ref = refs[2 * num_envs]              # flat (nb * E,) SMEM partials
        b = pl.program_id(0)

        cols = None
        row_mask = None
        for e in range(num_envs):
            logits = refs[2 * e][...].astype(jnp.float32)   # (TB, C)
            labels = refs[2 * e + 1][...]                   # (TB, 1) int32

            if cols is None:                      # generated once, reused per env
                cols = jax.lax.broadcasted_iota(jnp.int32, logits.shape, 1)
                if mask_rows:
                    rows = (jax.lax.broadcasted_iota(jnp.int32, (tile_rows, 1), 0)
                            + b * tile_rows)
                    row_mask = rows < n_rows

            # Stable log-softmax cross entropy: CE = logsumexp(logits) - logits[label]
            m = jnp.max(logits, axis=-1, keepdims=True)
            lse = m + jnp.log(jnp.sum(jnp.exp(logits - m), axis=-1, keepdims=True))
            label_logit = jnp.sum(jnp.where(cols == labels, logits, 0.0),
                                  axis=-1, keepdims=True)
            ce = lse - label_logit                          # (TB, 1)
            if mask_rows:
                # Trailing partial block: garbage rows -> 0 (select, no NaN prop).
                ce = jnp.where(row_mask, ce, 0.0)

            out_ref[b * num_envs + e] = jnp.sum(ce)         # per-(tile, env) partial
    return kernel


def invreg_loss(logits_list, labels_list, weights_list=None, *, tile_rows=None):
    """Mean absolute deviation of per-environment mean CE losses (scalar)."""
    num_envs = len(logits_list)
    if num_envs < 2:
        # Matches the module's eval-mode behavior (zero regularizer).
        return jnp.float32(0.0)
    if len(labels_list) != num_envs:
        raise ValueError("Length of logits_list and labels_list must match")
    if weights_list is not None:
        # TODO(synk): weighted path (softmax-normalized per-sample weights) not implemented in-kernel.
        raise NotImplementedError("weights_list path not implemented")

    logits_arrays = [jnp.asarray(l) for l in logits_list]      # keep native dtype (f32/bf16)
    labels_arrays = [jnp.asarray(l, jnp.int32).reshape(-1, 1) for l in labels_list]

    N, C = logits_arrays[0].shape
    for lg, lb in zip(logits_arrays, labels_arrays):
        if lg.shape != (N, C) or lb.shape != (N, 1):
            # TODO(synk): ragged per-env batch sizes not supported in-kernel.
            raise ValueError("all environments must share the same (N, C) shape")

    max_itemsize = max(lg.dtype.itemsize for lg in logits_arrays)
    if tile_rows is None:
        tile_rows = _choose_tile_rows(N, C, num_envs, max_itemsize)
    nb = pl.cdiv(N, tile_rows)
    mask_rows = (nb * tile_rows) != N

    in_specs = []
    operands = []
    for lg, lb in zip(logits_arrays, labels_arrays):
        in_specs.append(pl.BlockSpec((tile_rows, C), lambda b: (b, 0)))   # logits tile
        in_specs.append(pl.BlockSpec((tile_rows, 1), lambda b: (b, 0)))   # labels tile
        operands.extend((lg, lb))

    bytes_in = (sum(lg.size * lg.dtype.itemsize for lg in logits_arrays)
                + num_envs * N * 4)
    cost = pl.CostEstimate(flops=6 * num_envs * N * C,
                           transcendentals=num_envs * N * (C + 1),
                           bytes_accessed=int(bytes_in + nb * num_envs * 4))

    block_bytes = sum(tile_rows * (C * lg.dtype.itemsize + 4) for lg in logits_arrays)
    vmem_limit = int(min(64 << 20, max(32 << 20, int(1.25 * 2 * block_bytes))))

    kernel = _make_kernel(num_envs, N, tile_rows, mask_rows)
    partials = pl.pallas_call(
        kernel,
        out_shape=jax.ShapeDtypeStruct((nb * num_envs,), jnp.float32),
        grid=(nb,),
        in_specs=in_specs,
        out_specs=pl.BlockSpec(memory_space=pltpu.MemorySpace.SMEM),
        compiler_params=pltpu.CompilerParams(
            dimension_semantics=("arbitrary",),   # batch axis is a streaming reduction
            vmem_limit_bytes=vmem_limit),
        cost_estimate=cost,
    )(*operands)

    # Tiny scalar epilogue: per-env sums -> means -> MAD (better precision than
    # a single running f32 accumulator; negligible work for XLA).
    sums = jnp.sum(partials.reshape(nb, num_envs), axis=0)     # (E,)
    losses = sums * jnp.float32(1.0 / N)
    mean_loss = jnp.mean(losses)
    return jnp.mean(jnp.abs(losses - mean_loss))


def _invreg_ref(logits_list, labels_list):
    """Pure-JAX reference of the module's unweighted forward."""
    losses = []
    for lg, lb in zip(logits_list, labels_list):
        lg = jnp.asarray(lg, jnp.float32)
        lb = jnp.asarray(lb, jnp.int32)
        lse = jax.scipy.special.logsumexp(lg, axis=-1)
        ll = jnp.take_along_axis(lg, lb[:, None], axis=-1)[:, 0]
        losses.append(jnp.mean(lse - ll))
    lt = jnp.stack(losses)
    return jnp.mean(jnp.abs(lt - jnp.mean(lt)))


if __name__ == "__main__":
    # Case 1: small problem, single full-extent batch tile per env.
    num_envs, N, C = 3, 64, 8
    keys = jax.random.split(jax.random.PRNGKey(0), 2 * num_envs)
    logits_list = [jax.random.normal(keys[2 * i], (N, C), dtype=jnp.float32)
                   for i in range(num_envs)]
    labels_list = [jax.random.randint(keys[2 * i + 1], (N,), 0, C, dtype=jnp.int32)
                   for i in range(num_envs)]
    mad = invreg_loss(logits_list, labels_list)
    jax.block_until_ready(mad)
    ref = _invreg_ref(logits_list, labels_list)
    assert jnp.allclose(mad, ref, rtol=1e-5, atol=1e-5), (mad, ref)

    # Case 2: partial trailing batch tile (exercises the in-kernel row mask
    # that replaced the old jnp.pad path).
    num_envs2, N2, C2 = 2, 40, 8
    keys2 = jax.random.split(jax.random.PRNGKey(1), 2 * num_envs2)
    logits_list2 = [jax.random.normal(keys2[2 * i], (N2, C2), dtype=jnp.float32)
                    for i in range(num_envs2)]
    labels_list2 = [jax.random.randint(keys2[2 * i + 1], (N2,), 0, C2, dtype=jnp.int32)
                    for i in range(num_envs2)]
    mad2 = invreg_loss(logits_list2, labels_list2, tile_rows=16)
    jax.block_until_ready(mad2)
    ref2 = _invreg_ref(logits_list2, labels_list2)
    assert jnp.allclose(mad2, ref2, rtol=1e-5, atol=1e-5), (mad2, ref2)

    print("KERNEL_OK")
</pallas_src>

<mosaic_0001>
module attributes {stable_mosaic.version = 11 : i64} {
  func.func @kernel(%arg0: i32, %arg1: memref<64x8xf32, #tpu.memory_space<vmem>>, %arg2: memref<64x1xi32, #tpu.memory_space<vmem>>, %arg3: memref<64x8xf32, #tpu.memory_space<vmem>>, %arg4: memref<64x1xi32, #tpu.memory_space<vmem>>, %arg5: memref<64x8xf32, #tpu.memory_space<vmem>>, %arg6: memref<64x1xi32, #tpu.memory_space<vmem>>, %arg7: memref<3xf32, #tpu.memory_space<smem>>) attributes {dimension_semantics = [#tpu.dimension_semantics<arbitrary>], iteration_bounds = array<i64: 1>, scalar_prefetch = 0 : i64, scratch_operands = 0 : i64, tpu.core_type = #tpu.core_type<tc>, window_params = [{transform_indices = @transform_0, window_bounds = array<i64: 64, 8>}, {transform_indices = @transform_1, window_bounds = array<i64: 64, 1>}, {transform_indices = @transform_2, window_bounds = array<i64: 64, 8>}, {transform_indices = @transform_3, window_bounds = array<i64: 64, 1>}, {transform_indices = @transform_4, window_bounds = array<i64: 64, 8>}, {transform_indices = @transform_5, window_bounds = array<i64: 64, 1>}, {transform_indices = @transform_6, window_bounds = array<i64: 3>}]} {
    %c0 = arith.constant 0 : index
    %c0_0 = arith.constant 0 : index
    %0 = vector.load %arg1[%c0, %c0_0] : memref<64x8xf32, #tpu.memory_space<vmem>>, vector<64x8xf32>
    %c0_1 = arith.constant 0 : index
    %c0_2 = arith.constant 0 : index
    %1 = vector.load %arg2[%c0_1, %c0_2] : memref<64x1xi32, #tpu.memory_space<vmem>>, vector<64x1xi32>
    %2 = tpu.iota {dimensions = array<i32: 1>} : vector<64x8xi32>
    %cst = arith.constant dense<0xFF800000> : vector<64xf32>
    %3 = vector.multi_reduction <maximumf>, %0, %cst [1] : vector<64x8xf32> to vector<64xf32>
    %4 = vector.shape_cast %3 : vector<64xf32> to vector<64x1xf32>
    %5 = vector.broadcast %4 : vector<64x1xf32> to vector<64x8xf32>
    %6 = arith.subf %0, %5 : vector<64x8xf32>
    %7 = math.exp %6 : vector<64x8xf32>
    %cst_3 = arith.constant dense<0.000000e+00> : vector<64xf32>
    %8 = vector.multi_reduction <add>, %7, %cst_3 [1] : vector<64x8xf32> to vector<64xf32>
    %9 = vector.shape_cast %8 : vector<64xf32> to vector<64x1xf32>
    %10 = math.log %9 : vector<64x1xf32>
    %11 = arith.addf %4, %10 : vector<64x1xf32>
    %12 = vector.broadcast %1 : vector<64x1xi32> to vector<64x8xi32>
    %13 = arith.cmpi eq, %2, %12 : vector<64x8xi32>
    %cst_4 = arith.constant 0.000000e+00 : f32
    %14 = vector.broadcast %cst_4 : f32 to vector<64x8xf32>
    %15 = arith.select %13, %0, %14 : vector<64x8xi1>, vector<64x8xf32>
    %cst_5 = arith.constant dense<0.000000e+00> : vector<64xf32>
    %16 = vector.multi_reduction <add>, %15, %cst_5 [1] : vector<64x8xf32> to vector<64xf32>
    %17 = vector.shape_cast %16 : vector<64xf32> to vector<64x1xf32>
    %18 = arith.subf %11, %17 : vector<64x1xf32>
    %19 = vector.shape_cast %18 : vector<64x1xf32> to vector<1x64x1xf32>
    %cst_6 = arith.constant dense<0.000000e+00> : vector<1xf32>
    %20 = vector.multi_reduction <add>, %19, %cst_6 [1, 2] : vector<1x64x1xf32> to vector<1xf32>
    %21 = vector.shape_cast %20 : vector<1xf32> to vector<1x1x1xf32>
    %22 = vector.extract %21[0, 0, 0] : f32 from vector<1x1x1xf32>
    %c3_i32 = arith.constant 3 : i32
    %23 = arith.muli %arg0, %c3_i32 : i32
    %c0_i32 = arith.constant 0 : i32
    %24 = arith.addi %23, %c0_i32 : i32
    %25 = arith.index_cast %24 : i32 to index
    %26 = memref.load %arg7[%25] : memref<3xf32, #tpu.memory_space<smem>>
    memref.store %22, %arg7[%25] : memref<3xf32, #tpu.memory_space<smem>>
    %c0_7 = arith.constant 0 : index
    %c0_8 = arith.constant 0 : index
    %27 = vector.load %arg3[%c0_7, %c0_8] : memref<64x8xf32, #tpu.memory_space<vmem>>, vector<64x8xf32>
    %c0_9 = arith.constant 0 : index
    %c0_10 = arith.constant 0 : index
    %28 = vector.load %arg4[%c0_9, %c0_10] : memref<64x1xi32, #tpu.memory_space<vmem>>, vector<64x1xi32>
    %cst_11 = arith.constant dense<0xFF800000> : vector<64xf32>
    %29 = vector.multi_reduction <maximumf>, %27, %cst_11 [1] : vector<64x8xf32> to vector<64xf32>
    %30 = vector.shape_cast %29 : vector<64xf32> to vector<64x1xf32>
    %31 = vector.broadcast %30 : vector<64x1xf32> to vector<64x8xf32>
    %32 = arith.subf %27, %31 : vector<64x8xf32>
    %33 = math.exp %32 : vector<64x8xf32>
    %cst_12 = arith.constant dense<0.000000e+00> : vector<64xf32>
    %34 = vector.multi_reduction <add>, %33, %cst_12 [1] : vector<64x8xf32> to vector<64xf32>
    %35 = vector.shape_cast %34 : vector<64xf32> to vector<64x1xf32>
    %36 = math.log %35 : vector<64x1xf32>
    %37 = arith.addf %30, %36 : vector<64x1xf32>
    %38 = vector.broadcast %28 : vector<64x1xi32> to vector<64x8xi32>
    %39 = arith.cmpi eq, %2, %38 : vector<64x8xi32>
    %cst_13 = arith.constant 0.000000e+00 : f32
    %40 = vector.broadcast %cst_13 : f32 to vector<64x8xf32>
    %41 = arith.select %39, %27, %40 : vector<64x8xi1>, vector<64x8xf32>
    %cst_14 = arith.constant dense<0.000000e+00> : vector<64xf32>
    %42 = vector.multi_reduction <add>, %41, %cst_14 [1] : vector<64x8xf32> to vector<64xf32>
    %43 = vector.shape_cast %42 : vector<64xf32> to vector<64x1xf32>
    %44 = arith.subf %37, %43 : vector<64x1xf32>
    %45 = vector.shape_cast %44 : vector<64x1xf32> to vector<1x64x1xf32>
    %cst_15 = arith.constant dense<0.000000e+00> : vector<1xf32>
    %46 = vector.multi_reduction <add>, %45, %cst_15 [1, 2] : vector<1x64x1xf32> to vector<1xf32>
    %47 = vector.shape_cast %46 : vector<1xf32> to vector<1x1x1xf32>
    %48 = vector.extract %47[0, 0, 0] : f32 from vector<1x1x1xf32>
    %c3_i32_16 = arith.constant 3 : i32
    %49 = arith.muli %arg0, %c3_i32_16 : i32
    %c1_i32 = arith.constant 1 : i32
    %50 = arith.addi %49, %c1_i32 : i32
    %51 = arith.index_cast %50 : i32 to index
    %52 = memref.load %arg7[%51] : memref<3xf32, #tpu.memory_space<smem>>
    memref.store %48, %arg7[%51] : memref<3xf32, #tpu.memory_space<smem>>
    %c0_17 = arith.constant 0 : index
    %c0_18 = arith.constant 0 : index
    %53 = vector.load %arg5[%c0_17, %c0_18] : memref<64x8xf32, #tpu.memory_space<vmem>>, vector<64x8xf32>
    %c0_19 = arith.constant 0 : index
    %c0_20 = arith.constant 0 : index
    %54 = vector.load %arg6[%c0_19, %c0_20] : memref<64x1xi32, #tpu.memory_space<vmem>>, vector<64x1xi32>
    %cst_21 = arith.constant dense<0xFF800000> : vector<64xf32>
    %55 = vector.multi_reduction <maximumf>, %53, %cst_21 [1] : vector<64x8xf32> to vector<64xf32>
    %56 = vector.shape_cast %55 : vector<64xf32> to vector<64x1xf32>
    %57 = vector.broadcast %56 : vector<64x1xf32> to vector<64x8xf32>
    %58 = arith.subf %53, %57 : vector<64x8xf32>
    %59 = math.exp %58 : vector<64x8xf32>
    %cst_22 = arith.constant dense<0.000000e+00> : vector<64xf32>
    %60 = vector.multi_reduction <add>, %59, %cst_22 [1] : vector<64x8xf32> to vector<64xf32>
    %61 = vector.shape_cast %60 : vector<64xf32> to vector<64x1xf32>
    %62 = math.log %61 : vector<64x1xf32>
    %63 = arith.addf %56, %62 : vector<64x1xf32>
    %64 = vector.broadcast %54 : vector<64x1xi32> to vector<64x8xi32>
    %65 = arith.cmpi eq, %2, %64 : vector<64x8xi32>
    %cst_23 = arith.constant 0.000000e+00 : f32
    %66 = vector.broadcast %cst_23 : f32 to vector<64x8xf32>
    %67 = arith.select %65, %53, %66 : vector<64x8xi1>, vector<64x8xf32>
    %cst_24 = arith.constant dense<0.000000e+00> : vector<64xf32>
    %68 = vector.multi_reduction <add>, %67, %cst_24 [1] : vector<64x8xf32> to vector<64xf32>
    %69 = vector.shape_cast %68 : vector<64xf32> to vector<64x1xf32>
    %70 = arith.subf %63, %69 : vector<64x1xf32>
    %71 = vector.shape_cast %70 : vector<64x1xf32> to vector<1x64x1xf32>
    %cst_25 = arith.constant dense<0.000000e+00> : vector<1xf32>
    %72 = vector.multi_reduction <add>, %71, %cst_25 [1, 2] : vector<1x64x1xf32> to vector<1xf32>
    %73 = vector.shape_cast %72 : vector<1xf32> to vector<1x1x1xf32>
    %74 = vector.extract %73[0, 0, 0] : f32 from vector<1x1x1xf32>
    %c3_i32_26 = arith.constant 3 : i32
    %75 = arith.muli %arg0, %c3_i32_26 : i32
    %c2_i32 = arith.constant 2 : i32
    %76 = arith.addi %75, %c2_i32 : i32
    %77 = arith.index_cast %76 : i32 to index
    %78 = memref.load %arg7[%77] : memref<3xf32, #tpu.memory_space<smem>>
    memref.store %74, %arg7[%77] : memref<3xf32, #tpu.memory_space<smem>>
    return
  }
  func.func @transform_0(%arg0: i32) -> (i32, i32) {
    %c0_i32 = arith.constant 0 : i32
    %c0_i32_0 = arith.constant 0 : i32
    return %arg0, %c0_i32 : i32, i32
  }
  func.func @transform_1(%arg0: i32) -> (i32, i32) {
    %c0_i32 = arith.constant 0 : i32
    %c0_i32_0 = arith.constant 0 : i32
    return %arg0, %c0_i32 : i32, i32
  }
  func.func @transform_2(%arg0: i32) -> (i32, i32) {
    %c0_i32 = arith.constant 0 : i32
    %c0_i32_0 = arith.constant 0 : i32
    return %arg0, %c0_i32 : i32, i32
  }
  func.func @transform_3(%arg0: i32) -> (i32, i32) {
    %c0_i32 = arith.constant 0 : i32
    %c0_i32_0 = arith.constant 0 : i32
    return %arg0, %c0_i32 : i32, i32
  }
  func.func @transform_4(%arg0: i32) -> (i32, i32) {
    %c0_i32 = arith.constant 0 : i32
    %c0_i32_0 = arith.constant 0 : i32
    return %arg0, %c0_i32 : i32, i32
  }
  func.func @transform_5(%arg0: i32) -> (i32, i32) {
    %c0_i32 = arith.constant 0 : i32
    %c0_i32_0 = arith.constant 0 : i32
    return %arg0, %c0_i32 : i32, i32
  }
  func.func @transform_6(%arg0: i32) -> i32 {
    %c0_i32 = arith.constant 0 : i32
    %c0_i32_0 = arith.constant 0 : i32
    return %c0_i32 : i32
  }
}

</mosaic_0001>

<llo_original>
// kernel: tpu_custom_call.1
$region0: #{tpu_custom_call.1}
  #allocation0 [shape = 'u32[]', space=smem, size = 0x4, offset = 0x4, fixed_abs, tag = 'smem constant byte address 0x4 - core index']
  #allocation1 [shape = 'u32[144,128]{1,0:T(1,128)}', space=vmem, size = 0x12000, scoped, tag = 'internal scratch']
  %s0 = inlined_call_operand.vmem [shape: f32[64,8], index: 0, kind: input, shape index: {}]
  %s1 = inlined_call_operand.vmem [shape: s32[64,1], index: 1, kind: input, shape index: {}]
  %s2 = inlined_call_operand.vmem [shape: f32[64,8], index: 2, kind: input, shape index: {}]
  %s3 = inlined_call_operand.vmem [shape: s32[64,1], index: 3, kind: input, shape index: {}]
  %s4 = inlined_call_operand.vmem [shape: f32[64,8], index: 4, kind: input, shape index: {}]
  %s5 = inlined_call_operand.vmem [shape: s32[64,1], index: 5, kind: input, shape index: {}]
  %s6 = inlined_call_operand.hbm [shape: f32[3], index: 6, kind: output, shape index: {}]
  %s7 = sld [smem:[#allocation0]]
  $region34: #{tpu_custom_call.1} parent=0
    _
  %s9 = ssub.s32 1, %s7
  %s10 = scalar_select 0, %s9, %s7
  $region1: #{tpu_custom_call.1} parent=0
    #allocation2 [shape = 'u8[512]{0}', space=smem, size = 0x200, scoped, tag = 'output window, operand 0, single buffered']
    #allocation3 [shape = 's32[1]{0}', space=sflag, size = 0x4, scoped, tag = 'scoped memory for tpu_custom_call.1']
    %11 = vsyncpa [#allocation3], 0
    // Predicated region
    $region2: #{tpu_custom_call.1} parent=1 // pred_check
      _
    $region3: #{tpu_custom_call.1} parent=1 // pred_check_branch
      %13 = sbr.rel (0) target = $region5
    $region4: #{tpu_custom_call.1} parent=1 // pred_region
      _
    $region5: #{tpu_custom_call.1} parent=1 // pred_fallthru
      _
    // Predicated region
    $region6: #{tpu_custom_call.1} parent=1 // pred_check
      _
    $region7: #{tpu_custom_call.1} parent=1 // pred_check_branch
      %15 = sbr.rel (0) target = $region9
    $region8: #{tpu_custom_call.1} parent=1 // pred_region
      _
    $region9: #{tpu_custom_call.1} parent=1 // pred_fallthru
      _
    // Predicated region
    $region10: #{tpu_custom_call.1} parent=1 // pred_check
      _
    $region11: #{tpu_custom_call.1} parent=1 // pred_check_branch
      %17 = sbr.rel (0) target = $region13
    $region12: #{tpu_custom_call.1} parent=1 // pred_region
      _
    $region13: #{tpu_custom_call.1} parent=1 // pred_fallthru
      _
    // Predicated region
    $region14: #{tpu_custom_call.1} parent=1 // pred_check
      _
    $region15: #{tpu_custom_call.1} parent=1 // pred_check_branch
      %19 = sbr.rel (0) target = $region17
    $region16: #{tpu_custom_call.1} parent=1 // pred_region
      _
    $region17: #{tpu_custom_call.1} parent=1 // pred_fallthru
      _
    // Predicated region
    $region18: #{tpu_custom_call.1} parent=1 // pred_check
      _
    $region19: #{tpu_custom_call.1} parent=1 // pred_check_branch
      %21 = sbr.rel (0) target = $region21
    $region20: #{tpu_custom_call.1} parent=1 // pred_region
      _
    $region21: #{tpu_custom_call.1} parent=1 // pred_fallthru
      _
    // Predicated region
    $region22: #{tpu_custom_call.1} parent=1 // pred_check
      _
    $region23: #{tpu_custom_call.1} parent=1 // pred_check_branch
      %23 = sbr.rel (0) target = $region25
    $region24: #{tpu_custom_call.1} parent=1 // pred_region
      _
    $region25: #{tpu_custom_call.1} parent=1 // pred_fallthru
      _
    %v24 = vld [vmem:[%s0] sm:$0xff]
    %v25 = vld [vmem:[%s0 + $0x8] sm:$0xff]
    %v26 = vld [vmem:[%s0 + $0x10] sm:$0xff]
    %v27 = vld [vmem:[%s0 + $0x18] sm:$0xff]
    %v28 = vld [vmem:[%s0 + $0x20] sm:$0xff]
    %v29 = vld [vmem:[%s0 + $0x28] sm:$0xff]
    %v30 = vld [vmem:[%s0 + $0x30] sm:$0xff]
    %v31 = vld [vmem:[%s0 + $0x38] sm:$0xff]
    %v32 = vld [vmem:[%s1] sm:$0xff]
    %v33 = vld [vmem:[%s1 + $0x8] sm:$0xff]
    %v34 = vld [vmem:[%s1 + $0x10] sm:$0xff]
    %v35 = vld [vmem:[%s1 + $0x18] sm:$0xff]
    %v36 = vld [vmem:[%s1 + $0x20] sm:$0xff]
    %v37 = vld [vmem:[%s1 + $0x28] sm:$0xff]
    %v38 = vld [vmem:[%s1 + $0x30] sm:$0xff]
    %v39 = vld [vmem:[%s1 + $0x38] sm:$0xff]
    %v40 = vlaneseq
    %v41 = vand.u32 %v40, 127
    %vm42 = vcmask 64512
    %v43 = vsel %vm42, %v24, -inf
    %44 = vmax.xlane.f32.xlu0 %v43
    %v45 = vpop.xlane.xlu0 %44
    %v46 = vsel %vm42, %v25, -inf
    %47 = vmax.xlane.f32.xlu0 %v46
    %v48 = vpop.xlane.xlu0 %47
    %v49 = vsel %vm42, %v26, -inf
    %50 = vmax.xlane.f32.xlu0 %v49
    %v51 = vpop.xlane.xlu0 %50
    %v52 = vsel %vm42, %v27, -inf
    %53 = vmax.xlane.f32.xlu0 %v52
    %v54 = vpop.xlane.xlu0 %53
    %v55 = vsel %vm42, %v28, -inf
    %56 = vmax.xlane.f32.xlu0 %v55
    %v57 = vpop.xlane.xlu0 %56
    %v58 = vsel %vm42, %v29, -inf
    %59 = vmax.xlane.f32.xlu0 %v58
    %v60 = vpop.xlane.xlu0 %59
    %v61 = vsel %vm42, %v30, -inf
    %62 = vmax.xlane.f32.xlu0 %v61
    %v63 = vpop.xlane.xlu0 %62
    %v64 = vsel %vm42, %v31, -inf
    %65 = vmax.xlane.f32.xlu0 %v64
    %v66 = vpop.xlane.xlu0 %65
    %v67 = vsub.f32 %v24, %v45
    %v68 = vsub.f32 %v25, %v48
    %v69 = vsub.f32 %v26, %v51
    %v70 = vsub.f32 %v27, %v54
    %v71 = vsub.f32 %v28, %v57
    %v72 = vsub.f32 %v29, %v60
    %v73 = vsub.f32 %v30, %v63
    %v74 = vsub.f32 %v31, %v66
    %v75 = vmul.f32 %v67, 1.442695
    %v76 = vpow.pop %v75
    %v77 = vmul.f32 %v68, 1.442695
    %v78 = vpow.pop %v77
    %v79 = vmul.f32 %v69, 1.442695
    %v80 = vpow.pop %v79
    %v81 = vmul.f32 %v70, 1.442695
    %v82 = vpow.pop %v81
    %v83 = vmul.f32 %v71, 1.442695
    %v84 = vpow.pop %v83
    %v85 = vmul.f32 %v72, 1.442695
    %v86 = vpow.pop %v85
    %v87 = vmul.f32 %v73, 1.442695
    %v88 = vpow.pop %v87
    %v89 = vmul.f32 %v74, 1.442695
    %v90 = vpow.pop %v89
    %v91 = vsel %vm42, %v76, 0.0
    %92 = vadd.xlane.f32.xlu0 %v91
    %v93 = vpop.xlane.xlu0 %92
    %v94 = vsel %vm42, %v78, 0.0
    %95 = vadd.xlane.f32.xlu0 %v94
    %v96 = vpop.xlane.xlu0 %95
    %v97 = vsel %vm42, %v80, 0.0
    %98 = vadd.xlane.f32.xlu0 %v97
    %v99 = vpop.xlane.xlu0 %98
    %v100 = vsel %vm42, %v82, 0.0
    %101 = vadd.xlane.f32.xlu0 %v100
    %v102 = vpop.xlane.xlu0 %101
    %v103 = vsel %vm42, %v84, 0.0
    %104 = vadd.xlane.f32.xlu0 %v103
    %v105 = vpop.xlane.xlu0 %104
    %v106 = vsel %vm42, %v86, 0.0
    %107 = vadd.xlane.f32.xlu0 %v106
    %v108 = vpop.xlane.xlu0 %107
    %v109 = vsel %vm42, %v88, 0.0
    %110 = vadd.xlane.f32.xlu0 %v109
    %v111 = vpop.xlane.xlu0 %110
    %v112 = vsel %vm42, %v90, 0.0
    %113 = vadd.xlane.f32.xlu0 %v112
    %v114 = vpop.xlane.xlu0 %113
    %v115 = vlog2.pop %v93
    %v116 = vmul.f32 %v115, 0.6931472
    %v117 = vlog2.pop %v96
    %v118 = vmul.f32 %v117, 0.6931472
    %v119 = vlog2.pop %v99
    %v120 = vmul.f32 %v119, 0.6931472
    %v121 = vlog2.pop %v102
    %v122 = vmul.f32 %v121, 0.6931472
    %v123 = vlog2.pop %v105
    %v124 = vmul.f32 %v123, 0.6931472
    %v125 = vlog2.pop %v108
    %v126 = vmul.f32 %v125, 0.6931472
    %v127 = vlog2.pop %v111
    %v128 = vmul.f32 %v127, 0.6931472
    %v129 = vlog2.pop %v114
    %v130 = vmul.f32 %v129, 0.6931472
    %v131 = vadd.f32 %v45, %v116
    %v132 = vadd.f32 %v48, %v118
    %v133 = vadd.f32 %v51, %v120
    %v134 = vadd.f32 %v54, %v122
    %v135 = vadd.f32 %v57, %v124
    %v136 = vadd.f32 %v60, %v126
    %v137 = vadd.f32 %v63, %v128
    %v138 = vadd.f32 %v66, %v130
    %139 = vset.pattern.permute.xlu0 0
    %140 = vperm.xlu0 %139, %v32
    %v141 = vpop.permute.xlu0 %140
    %142 = vset.pattern.permute.xlu0 0
    %143 = vperm.xlu0 %142, %v33
    %v144 = vpop.permute.xlu0 %143
    %145 = vset.pattern.permute.xlu0 0
    %146 = vperm.xlu0 %145, %v34
    %v147 = vpop.permute.xlu0 %146
    %148 = vset.pattern.permute.xlu0 0
    %149 = vperm.xlu0 %148, %v35
    %v150 = vpop.permute.xlu0 %149
    %151 = vset.pattern.permute.xlu0 0
    %152 = vperm.xlu0 %151, %v36
    %v153 = vpop.permute.xlu0 %152
    %154 = vset.pattern.permute.xlu0 0
    %155 = vperm.xlu0 %154, %v37
    %v156 = vpop.permute.xlu0 %155
    %157 = vset.pattern.permute.xlu0 0
    %158 = vperm.xlu0 %157, %v38
    %v159 = vpop.permute.xlu0 %158
    %160 = vset.pattern.permute.xlu0 0
    %161 = vperm.xlu0 %160, %v39
    %v162 = vpop.permute.xlu0 %161
    %vm163 = vcmp.eq.s32.totalorder %v41, %v141
    %vm164 = vcmp.eq.s32.totalorder %v41, %v144
    %vm165 = vcmp.eq.s32.totalorder %v41, %v147
    %vm166 = vcmp.eq.s32.totalorder %v41, %v150
    %vm167 = vcmp.eq.s32.totalorder %v41, %v153
    %vm168 = vcmp.eq.s32.totalorder %v41, %v156
    %vm169 = vcmp.eq.s32.totalorder %v41, %v159
    %vm170 = vcmp.eq.s32.totalorder %v41, %v162
    %v171 = vsel %vm163, %v24, 0.0
    %v172 = vsel %vm164, %v25, 0.0
    %v173 = vsel %vm165, %v26, 0.0
    %v174 = vsel %vm166, %v27, 0.0
    %v175 = vsel %vm167, %v28, 0.0
    %v176 = vsel %vm168, %v29, 0.0
    %v177 = vsel %vm169, %v30, 0.0
    %v178 = vsel %vm170, %v31, 0.0
    %v179 = vsel %vm42, %v171, 0.0
    %180 = vadd.xlane.f32.xlu0 %v179
    %v181 = vpop.xlane.xlu0 %180
    %v182 = vsel %vm42, %v172, 0.0
    %183 = vadd.xlane.f32.xlu0 %v182
    %v184 = vpop.xlane.xlu0 %183
    %v185 = vsel %vm42, %v173, 0.0
    %186 = vadd.xlane.f32.xlu0 %v185
    %v187 = vpop.xlane.xlu0 %186
    %v188 = vsel %vm42, %v174, 0.0
    %189 = vadd.xlane.f32.xlu0 %v188
    %v190 = vpop.xlane.xlu0 %189
    %v191 = vsel %vm42, %v175, 0.0
    %192 = vadd.xlane.f32.xlu0 %v191
    %v193 = vpop.xlane.xlu0 %192
    %v194 = vsel %vm42, %v176, 0.0
    %195 = vadd.xlane.f32.xlu0 %v194
    %v196 = vpop.xlane.xlu0 %195
    %v197 = vsel %vm42, %v177, 0.0
    %198 = vadd.xlane.f32.xlu0 %v197
    %v199 = vpop.xlane.xlu0 %198
    %v200 = vsel %vm42, %v178, 0.0
    %201 = vadd.xlane.f32.xlu0 %v200
    %v202 = vpop.xlane.xlu0 %201
    %v203 = vsub.f32 %v131, %v181
    %v204 = vsub.f32 %v132, %v184
    %v205 = vsub.f32 %v133, %v187
    %v206 = vsub.f32 %v134, %v190
    %v207 = vsub.f32 %v135, %v193
    %v208 = vsub.f32 %v136, %v196
    %v209 = vsub.f32 %v137, %v199
    %v210 = vsub.f32 %v138, %v202
    %vm211 = vcmask 7168
    %v212 = vsel %vm211, %v203, 0.0
    %v213 = vsel %vm211, %v204, 0.0
    %v214 = vadd.f32 %v212, %v213
    %v215 = vsel %vm211, %v205, 0.0
    %v216 = vadd.f32 %v214, %v215
    %v217 = vsel %vm211, %v206, 0.0
    %v218 = vadd.f32 %v216, %v217
    %v219 = vsel %vm211, %v207, 0.0
    %v220 = vadd.f32 %v218, %v219
    %v221 = vsel %vm211, %v208, 0.0
    %v222 = vadd.f32 %v220, %v221
    %v223 = vsel %vm211, %v209, 0.0
    %v224 = vadd.f32 %v222, %v223
    %v225 = vsel %vm211, %v210, 0.0
    %v226 = vadd.f32 %v224, %v225
    %227 = vadd.xlane.f32.xlu0 %v226
    %v228 = vpop.xlane.xlu0 %227
    %v229 = vrot.slane %v228, 4
    %v230 = vadd.f32 %v228, %v229
    %v231 = vrot.slane %v230, 2
    %v232 = vadd.f32 %v230, %v231
    %v233 = vrot.slane %v232, 1
    %v234 = vadd.f32 %v232, %v233
    %s235 = vtos %v234
    %s236 = smul.u32 0, 3
    %s237 = scalar_lea.smem [#allocation2], %s236
    %238 = sst [smem:[%s237]] %s235
    %v239 = vld [vmem:[%s2] sm:$0xff]
    %v240 = vld [vmem:[%s2 + $0x8] sm:$0xff]
    %v241 = vld [vmem:[%s2 + $0x10] sm:$0xff]
    %v242 = vld [vmem:[%s2 + $0x18] sm:$0xff]
    %v243 = vld [vmem:[%s2 + $0x20] sm:$0xff]
    %v244 = vld [vmem:[%s2 + $0x28] sm:$0xff]
    %v245 = vld [vmem:[%s2 + $0x30] sm:$0xff]
    %v246 = vld [vmem:[%s2 + $0x38] sm:$0xff]
    %v247 = vld [vmem:[%s3] sm:$0xff]
    %v248 = vld [vmem:[%s3 + $0x8] sm:$0xff]
    %v249 = vld [vmem:[%s3 + $0x10] sm:$0xff]
    %v250 = vld [vmem:[%s3 + $0x18] sm:$0xff]
    %v251 = vld [vmem:[%s3 + $0x20] sm:$0xff]
    %v252 = vld [vmem:[%s3 + $0x28] sm:$0xff]
    %v253 = vld [vmem:[%s3 + $0x30] sm:$0xff]
    %v254 = vld [vmem:[%s3 + $0x38] sm:$0xff]
    %v255 = vsel %vm42, %v239, -inf
    %256 = vmax.xlane.f32.xlu0 %v255
    %v257 = vpop.xlane.xlu0 %256
    %v258 = vsel %vm42, %v240, -inf
    %259 = vmax.xlane.f32.xlu0 %v258
    %v260 = vpop.xlane.xlu0 %259
    %v261 = vsel %vm42, %v241, -inf
    %262 = vmax.xlane.f32.xlu0 %v261
    %v263 = vpop.xlane.xlu0 %262
    %v264 = vsel %vm42, %v242, -inf
    %265 = vmax.xlane.f32.xlu0 %v264
    %v266 = vpop.xlane.xlu0 %265
    %v267 = vsel %vm42, %v243, -inf
    %268 = vmax.xlane.f32.xlu0 %v267
    %v269 = vpop.xlane.xlu0 %268
    %v270 = vsel %vm42, %v244, -inf
    %271 = vmax.xlane.f32.xlu0 %v270
    %v272 = vpop.xlane.xlu0 %271
    %v273 = vsel %vm42, %v245, -inf
    %274 = vmax.xlane.f32.xlu0 %v273
    %v275 = vpop.xlane.xlu0 %274
    %v276 = vsel %vm42, %v246, -inf
    %277 = vmax.xlane.f32.xlu0 %v276
    %v278 = vpop.xlane.xlu0 %277
    %v279 = vsub.f32 %v239, %v257
    %v280 = vsub.f32 %v240, %v260
    %v281 = vsub.f32 %v241, %v263
    %v282 = vsub.f32 %v242, %v266
    %v283 = vsub.f32 %v243, %v269
    %v284 = vsub.f32 %v244, %v272
    %v285 = vsub.f32 %v245, %v275
    %v286 = vsub.f32 %v246, %v278
    %v287 = vmul.f32 %v279, 1.442695
    %v288 = vpow.pop %v287
    %v289 = vmul.f32 %v280, 1.442695
    %v290 = vpow.pop %v289
    %v291 = vmul.f32 %v281, 1.442695
    %v292 = vpow.pop %v291
    %v293 = vmul.f32 %v282, 1.442695
    %v294 = vpow.pop %v293
    %v295 = vmul.f32 %v283, 1.442695
    %v296 = vpow.pop %v295
    %v297 = vmul.f32 %v284, 1.442695
    %v298 = vpow.pop %v297
    %v299 = vmul.f32 %v285, 1.442695
    %v300 = vpow.pop %v299
    %v301 = vmul.f32 %v286, 1.442695
    %v302 = vpow.pop %v301
    %v303 = vsel %vm42, %v288, 0.0
    %304 = vadd.xlane.f32.xlu0 %v303
    %v305 = vpop.xlane.xlu0 %304
    %v306 = vsel %vm42, %v290, 0.0
    %307 = vadd.xlane.f32.xlu0 %v306
    %v308 = vpop.xlane.xlu0 %307
    %v309 = vsel %vm42, %v292, 0.0
    %310 = vadd.xlane.f32.xlu0 %v309
    %v311 = vpop.xlane.xlu0 %310
    %v312 = vsel %vm42, %v294, 0.0
    %313 = vadd.xlane.f32.xlu0 %v312
    %v314 = vpop.xlane.xlu0 %313
    %v315 = vsel %vm42, %v296, 0.0
    %316 = vadd.xlane.f32.xlu0 %v315
    %v317 = vpop.xlane.xlu0 %316
    %v318 = vsel %vm42, %v298, 0.0
    %319 = vadd.xlane.f32.xlu0 %v318
    %v320 = vpop.xlane.xlu0 %319
    %v321 = vsel %vm42, %v300, 0.0
    %322 = vadd.xlane.f32.xlu0 %v321
    %v323 = vpop.xlane.xlu0 %322
    %v324 = vsel %vm42, %v302, 0.0
    %325 = vadd.xlane.f32.xlu0 %v324
    %v326 = vpop.xlane.xlu0 %325
    %v327 = vlog2.pop %v305
    %v328 = vmul.f32 %v327, 0.6931472
    %v329 = vlog2.pop %v308
    %v330 = vmul.f32 %v329, 0.6931472
    %v331 = vlog2.pop %v311
    %v332 = vmul.f32 %v331, 0.6931472
    %v333 = vlog2.pop %v314
    %v334 = vmul.f32 %v333, 0.6931472
    %v335 = vlog2.pop %v317
    %v336 = vmul.f32 %v335, 0.6931472
    %v337 = vlog2.pop %v320
    %v338 = vmul.f32 %v337, 0.6931472
    %v339 = vlog2.pop %v323
    %v340 = vmul.f32 %v339, 0.6931472
    %v341 = vlog2.pop %v326
    %v342 = vmul.f32 %v341, 0.6931472
    %v343 = vadd.f32 %v257, %v328
    %v344 = vadd.f32 %v260, %v330
    %v345 = vadd.f32 %v263, %v332
    %v346 = vadd.f32 %v266, %v334
    %v347 = vadd.f32 %v269, %v336
    %v348 = vadd.f32 %v272, %v338
    %v349 = vadd.f32 %v275, %v340
    %v350 = vadd.f32 %v278, %v342
    %351 = vset.pattern.permute.xlu0 0
    %352 = vperm.xlu0 %351, %v247
    %v353 = vpop.permute.xlu0 %352
    %354 = vset.pattern.permute.xlu0 0
    %355 = vperm.xlu0 %354, %v248
    %v356 = vpop.permute.xlu0 %355
    %357 = vset.pattern.permute.xlu0 0
    %358 = vperm.xlu0 %357, %v249
    %v359 = vpop.permute.xlu0 %358
    %360 = vset.pattern.permute.xlu0 0
    %361 = vperm.xlu0 %360, %v250
    %v362 = vpop.permute.xlu0 %361
    %363 = vset.pattern.permute.xlu0 0
    %364 = vperm.xlu0 %363, %v251
    %v365 = vpop.permute.xlu0 %364
    %366 = vset.pattern.permute.xlu0 0
    %367 = vperm.xlu0 %366, %v252
    %v368 = vpop.permute.xlu0 %367
    %369 = vset.pattern.permute.xlu0 0
    %370 = vperm.xlu0 %369, %v253
    %v371 = vpop.permute.xlu0 %370
    %372 = vset.pattern.permute.xlu0 0
    %373 = vperm.xlu0 %372, %v254
    %v374 = vpop.permute.xlu0 %373
    %vm375 = vcmp.eq.s32.totalorder %v41, %v353
    %vm376 = vcmp.eq.s32.totalorder %v41, %v356
    %vm377 = vcmp.eq.s32.totalorder %v41, %v359
    %vm378 = vcmp.eq.s32.totalorder %v41, %v362
    %vm379 = vcmp.eq.s32.totalorder %v41, %v365
    %vm380 = vcmp.eq.s32.totalorder %v41, %v368
    %vm381 = vcmp.eq.s32.totalorder %v41, %v371
    %vm382 = vcmp.eq.s32.totalorder %v41, %v374
    %v383 = vsel %vm375, %v239, 0.0
    %v384 = vsel %vm376, %v240, 0.0
    %v385 = vsel %vm377, %v241, 0.0
    %v386 = vsel %vm378, %v242, 0.0
    %v387 = vsel %vm379, %v243, 0.0
    %v388 = vsel %vm380, %v244, 0.0
    %v389 = vsel %vm381, %v245, 0.0
    %v390 = vsel %vm382, %v246, 0.0
    %v391 = vsel %vm42, %v383, 0.0
    %392 = vadd.xlane.f32.xlu0 %v391
    %v393 = vpop.xlane.xlu0 %392
    %v394 = vsel %vm42, %v384, 0.0
    %395 = vadd.xlane.f32.xlu0 %v394
    %v396 = vpop.xlane.xlu0 %395
    %v397 = vsel %vm42, %v385, 0.0
    %398 = vadd.xlane.f32.xlu0 %v397
    %v399 = vpop.xlane.xlu0 %398
    %v400 = vsel %vm42, %v386, 0.0
    %401 = vadd.xlane.f32.xlu0 %v400
    %v402 = vpop.xlane.xlu0 %401
    %v403 = vsel %vm42, %v387, 0.0
    %404 = vadd.xlane.f32.xlu0 %v403
    %v405 = vpop.xlane.xlu0 %404
    %v406 = vsel %vm42, %v388, 0.0
    %407 = vadd.xlane.f32.xlu0 %v406
    %v408 = vpop.xlane.xlu0 %407
    %v409 = vsel %vm42, %v389, 0.0
    %410 = vadd.xlane.f32.xlu0 %v409
    %v411 = vpop.xlane.xlu0 %410
    %v412 = vsel %vm42, %v390, 0.0
    %413 = vadd.xlane.f32.xlu0 %v412
    %v414 = vpop.xlane.xlu0 %413
    %v415 = vsub.f32 %v343, %v393
    %v416 = vsub.f32 %v344, %v396
    %v417 = vsub.f32 %v345, %v399
    %v418 = vsub.f32 %v346, %v402
    %v419 = vsub.f32 %v347, %v405
    %v420 = vsub.f32 %v348, %v408
    %v421 = vsub.f32 %v349, %v411
    %v422 = vsub.f32 %v350, %v414
    %v423 = vsel %vm211, %v415, 0.0
    %v424 = vsel %vm211, %v416, 0.0
    %v425 = vadd.f32 %v423, %v424
    %v426 = vsel %vm211, %v417, 0.0
    %v427 = vadd.f32 %v425, %v426
    %v428 = vsel %vm211, %v418, 0.0
    %v429 = vadd.f32 %v427, %v428
    %v430 = vsel %vm211, %v419, 0.0
    %v431 = vadd.f32 %v429, %v430
    %v432 = vsel %vm211, %v420, 0.0
    %v433 = vadd.f32 %v431, %v432
    %v434 = vsel %vm211, %v421, 0.0
    %v435 = vadd.f32 %v433, %v434
    %v436 = vsel %vm211, %v422, 0.0
    %v437 = vadd.f32 %v435, %v436
    %438 = vadd.xlane.f32.xlu0 %v437
    %v439 = vpop.xlane.xlu0 %438
    %v440 = vrot.slane %v439, 4
    %v441 = vadd.f32 %v439, %v440
    %v442 = vrot.slane %v441, 2
    %v443 = vadd.f32 %v441, %v442
    %v444 = vrot.slane %v443, 1
    %v445 = vadd.f32 %v443, %v444
    %s446 = vtos %v445
    %s447 = sadd.s32 %s236, 1
    %s448 = scalar_lea.smem [#allocation2], %s447
    %449 = sst [smem:[%s448]] %s446
    %v450 = vld [vmem:[%s4] sm:$0xff]
    %v451 = vld [vmem:[%s4 + $0x8] sm:$0xff]
    %v452 = vld [vmem:[%s4 + $0x10] sm:$0xff]
    %v453 = vld [vmem:[%s4 + $0x18] sm:$0xff]
    %v454 = vld [vmem:[%s4 + $0x20] sm:$0xff]
    %v455 = vld [vmem:[%s4 + $0x28] sm:$0xff]
    %v456 = vld [vmem:[%s4 + $0x30] sm:$0xff]
    %v457 = vld [vmem:[%s4 + $0x38] sm:$0xff]
    %v458 = vld [vmem:[%s5] sm:$0xff]
    %v459 = vld [vmem:[%s5 + $0x8] sm:$0xff]
    %v460 = vld [vmem:[%s5 + $0x10] sm:$0xff]
    %v461 = vld [vmem:[%s5 + $0x18] sm:$0xff]
    %v462 = vld [vmem:[%s5 + $0x20] sm:$0xff]
    %v463 = vld [vmem:[%s5 + $0x28] sm:$0xff]
    %v464 = vld [vmem:[%s5 + $0x30] sm:$0xff]
    %v465 = vld [vmem:[%s5 + $0x38] sm:$0xff]
    %v466 = vsel %vm42, %v450, -inf
    %467 = vmax.xlane.f32.xlu0 %v466
    %v468 = vpop.xlane.xlu0 %467
    %v469 = vsel %vm42, %v451, -inf
    %470 = vmax.xlane.f32.xlu0 %v469
    %v471 = vpop.xlane.xlu0 %470
    %v472 = vsel %vm42, %v452, -inf
    %473 = vmax.xlane.f32.xlu0 %v472
    %v474 = vpop.xlane.xlu0 %473
    %v475 = vsel %vm42, %v453, -inf
    %476 = vmax.xlane.f32.xlu0 %v475
    %v477 = vpop.xlane.xlu0 %476
    %v478 = vsel %vm42, %v454, -inf
    %479 = vmax.xlane.f32.xlu0 %v478
    %v480 = vpop.xlane.xlu0 %479
    %v481 = vsel %vm42, %v455, -inf
    %482 = vmax.xlane.f32.xlu0 %v481
    %v483 = vpop.xlane.xlu0 %482
    %v484 = vsel %vm42, %v456, -inf
    %485 = vmax.xlane.f32.xlu0 %v484
    %v486 = vpop.xlane.xlu0 %485
    %v487 = vsel %vm42, %v457, -inf
    %488 = vmax.xlane.f32.xlu0 %v487
    %v489 = vpop.xlane.xlu0 %488
    %v490 = vsub.f32 %v450, %v468
    %v491 = vsub.f32 %v451, %v471
    %v492 = vsub.f32 %v452, %v474
    %v493 = vsub.f32 %v453, %v477
    %v494 = vsub.f32 %v454, %v480
    %v495 = vsub.f32 %v455, %v483
    %v496 = vsub.f32 %v456, %v486
    %v497 = vsub.f32 %v457, %v489
    %v498 = vmul.f32 %v490, 1.442695
    %v499 = vpow.pop %v498
    %v500 = vmul.f32 %v491, 1.442695
    %v501 = vpow.pop %v500
    %v502 = vmul.f32 %v492, 1.442695
    %v503 = vpow.pop %v502
    %v504 = vmul.f32 %v493, 1.442695
    %v505 = vpow.pop %v504
    %v506 = vmul.f32 %v494, 1.442695
    %v507 = vpow.pop %v506
    %v508 = vmul.f32 %v495, 1.442695
    %v509 = vpow.pop %v508
    %v510 = vmul.f32 %v496, 1.442695
    %v511 = vpow.pop %v510
    %v512 = vmul.f32 %v497, 1.442695
    %v513 = vpow.pop %v512
    %v514 = vsel %vm42, %v499, 0.0
    %515 = vadd.xlane.f32.xlu0 %v514
    %v516 = vpop.xlane.xlu0 %515
    %v517 = vsel %vm42, %v501, 0.0
    %518 = vadd.xlane.f32.xlu0 %v517
    %v519 = vpop.xlane.xlu0 %518
    %v520 = vsel %vm42, %v503, 0.0
    %521 = vadd.xlane.f32.xlu0 %v520
    %v522 = vpop.xlane.xlu0 %521
    %v523 = vsel %vm42, %v505, 0.0
    %524 = vadd.xlane.f32.xlu0 %v523
    %v525 = vpop.xlane.xlu0 %524
    %v526 = vsel %vm42, %v507, 0.0
    %527 = vadd.xlane.f32.xlu0 %v526
    %v528 = vpop.xlane.xlu0 %527
    %v529 = vsel %vm42, %v509, 0.0
    %530 = vadd.xlane.f32.xlu0 %v529
    %v531 = vpop.xlane.xlu0 %530
    %v532 = vsel %vm42, %v511, 0.0
    %533 = vadd.xlane.f32.xlu0 %v532
    %v534 = vpop.xlane.xlu0 %533
    %v535 = vsel %vm42, %v513, 0.0
    %536 = vadd.xlane.f32.xlu0 %v535
    %v537 = vpop.xlane.xlu0 %536
    %v538 = vlog2.pop %v516
    %v539 = vmul.f32 %v538, 0.6931472
    %v540 = vlog2.pop %v519
    %v541 = vmul.f32 %v540, 0.6931472
    %v542 = vlog2.pop %v522
    %v543 = vmul.f32 %v542, 0.6931472
    %v544 = vlog2.pop %v525
    %v545 = vmul.f32 %v544, 0.6931472
    %v546 = vlog2.pop %v528
    %v547 = vmul.f32 %v546, 0.6931472
    %v548 = vlog2.pop %v531
    %v549 = vmul.f32 %v548, 0.6931472
    %v550 = vlog2.pop %v534
    %v551 = vmul.f32 %v550, 0.6931472
    %v552 = vlog2.pop %v537
    %v553 = vmul.f32 %v552, 0.6931472
    %v554 = vadd.f32 %v468, %v539
    %v555 = vadd.f32 %v471, %v541
    %v556 = vadd.f32 %v474, %v543
    %v557 = vadd.f32 %v477, %v545
    %v558 = vadd.f32 %v480, %v547
    %v559 = vadd.f32 %v483, %v549
    %v560 = vadd.f32 %v486, %v551
    %v561 = vadd.f32 %v489, %v553
    %562 = vset.pattern.permute.xlu0 0
    %563 = vperm.xlu0 %562, %v458
    %v564 = vpop.permute.xlu0 %563
    %565 = vset.pattern.permute.xlu0 0
    %566 = vperm.xlu0 %565, %v459
    %v567 = vpop.permute.xlu0 %566
    %568 = vset.pattern.permute.xlu0 0
    %569 = vperm.xlu0 %568, %v460
    %v570 = vpop.permute.xlu0 %569
    %571 = vset.pattern.permute.xlu0 0
    %572 = vperm.xlu0 %571, %v461
    %v573 = vpop.permute.xlu0 %572
    %574 = vset.pattern.permute.xlu0 0
    %575 = vperm.xlu0 %574, %v462
    %v576 = vpop.permute.xlu0 %575
    %577 = vset.pattern.permute.xlu0 0
    %578 = vperm.xlu0 %577, %v463
    %v579 = vpop.permute.xlu0 %578
    %580 = vset.pattern.permute.xlu0 0
    %581 = vperm.xlu0 %580, %v464
    %v582 = vpop.permute.xlu0 %581
    %583 = vset.pattern.permute.xlu0 0
    %584 = vperm.xlu0 %583, %v465
    %v585 = vpop.permute.xlu0 %584
    %vm586 = vcmp.eq.s32.totalorder %v41, %v564
    %vm587 = vcmp.eq.s32.totalorder %v41, %v567
    %vm588 = vcmp.eq.s32.totalorder %v41, %v570
    %vm589 = vcmp.eq.s32.totalorder %v41, %v573
    %vm590 = vcmp.eq.s32.totalorder %v41, %v576
    %vm591 = vcmp.eq.s32.totalorder %v41, %v579
    %vm592 = vcmp.eq.s32.totalorder %v41, %v582
    %vm593 = vcmp.eq.s32.totalorder %v41, %v585
    %v594 = vsel %vm586, %v450, 0.0
    %v595 = vsel %vm587, %v451, 0.0
    %v596 = vsel %vm588, %v452, 0.0
    %v597 = vsel %vm589, %v453, 0.0
    %v598 = vsel %vm590, %v454, 0.0
    %v599 = vsel %vm591, %v455, 0.0
    %v600 = vsel %vm592, %v456, 0.0
    %v601 = vsel %vm593, %v457, 0.0
    %v602 = vsel %vm42, %v594, 0.0
    %603 = vadd.xlane.f32.xlu0 %v602
    %v604 = vpop.xlane.xlu0 %603
    %v605 = vsel %vm42, %v595, 0.0
    %606 = vadd.xlane.f32.xlu0 %v605
    %v607 = vpop.xlane.xlu0 %606
    %v608 = vsel %vm42, %v596, 0.0
    %609 = vadd.xlane.f32.xlu0 %v608
    %v610 = vpop.xlane.xlu0 %609
    %v611 = vsel %vm42, %v597, 0.0
    %612 = vadd.xlane.f32.xlu0 %v611
    %v613 = vpop.xlane.xlu0 %612
    %v614 = vsel %vm42, %v598, 0.0
    %615 = vadd.xlane.f32.xlu0 %v614
    %v616 = vpop.xlane.xlu0 %615
    %v617 = vsel %vm42, %v599, 0.0
    %618 = vadd.xlane.f32.xlu0 %v617
    %v619 = vpop.xlane.xlu0 %618
    %v620 = vsel %vm42, %v600, 0.0
    %621 = vadd.xlane.f32.xlu0 %v620
    %v622 = vpop.xlane.xlu0 %621
    %v623 = vsel %vm42, %v601, 0.0
    %624 = vadd.xlane.f32.xlu0 %v623
    %v625 = vpop.xlane.xlu0 %624
    %v626 = vsub.f32 %v554, %v604
    %v627 = vsub.f32 %v555, %v607
    %v628 = vsub.f32 %v556, %v610
    %v629 = vsub.f32 %v557, %v613
    %v630 = vsub.f32 %v558, %v616
    %v631 = vsub.f32 %v559, %v619
    %v632 = vsub.f32 %v560, %v622
    %v633 = vsub.f32 %v561, %v625
    %v634 = vsel %vm211, %v626, 0.0
    %v635 = vsel %vm211, %v627, 0.0
    %v636 = vadd.f32 %v634, %v635
    %v637 = vsel %vm211, %v628, 0.0
    %v638 = vadd.f32 %v636, %v637
    %v639 = vsel %vm211, %v629, 0.0
    %v640 = vadd.f32 %v638, %v639
    %v641 = vsel %vm211, %v630, 0.0
    %v642 = vadd.f32 %v640, %v641
    %v643 = vsel %vm211, %v631, 0.0
    %v644 = vadd.f32 %v642, %v643
    %v645 = vsel %vm211, %v632, 0.0
    %v646 = vadd.f32 %v644, %v645
    %v647 = vsel %vm211, %v633, 0.0
    %v648 = vadd.f32 %v646, %v647
    %649 = vadd.xlane.f32.xlu0 %v648
    %v650 = vpop.xlane.xlu0 %649
    %v651 = vrot.slane %v650, 4
    %v652 = vadd.f32 %v650, %v651
    %v653 = vrot.slane %v652, 2
    %v654 = vadd.f32 %v652, %v653
    %v655 = vrot.slane %v654, 1
    %v656 = vadd.f32 %v654, %v655
    %s657 = vtos %v656
    %s658 = sadd.s32 %s236, 2
    %s659 = scalar_lea.smem [#allocation2], %s658
    %660 = sst [smem:[%s659]] %s657
    // Predicated region
    $region26: #{tpu_custom_call.1} parent=1 // pred_check
      _
    $region27: #{tpu_custom_call.1} parent=1 // pred_check_branch
      %662 = sbr.rel (0) target = $region29
    $region28: #{tpu_custom_call.1} parent=1 // pred_region
      %s664 = ssub.s32 16, 16
      %665 = vsyncadd [#allocation3], %s664
      %668 = dma.smem_to_hbm [#allocation2], 16, %s6, [#allocation3]
    $region29: #{tpu_custom_call.1} parent=1 // pred_fallthru
      _
    // Predicated region
    $region30: #{tpu_custom_call.1} parent=1 // pred_check
      _
    $region31: #{tpu_custom_call.1} parent=1 // pred_check_branch
      %670 = sbr.rel (0) target = $region33
    $region32: #{tpu_custom_call.1} parent=1 // pred_region
      %671 = dma.done [#allocation3], 16
    $region33: #{tpu_custom_call.1} parent=1 // pred_fallthru
      _
    %672 = sfence
    %673 = vsyncpa [#allocation3], 1

</llo_original>
